<compile_context>
chip_gen: v7x
topology: tpu7x:2x2x1
jax: 0.10.0
libtpu: 0.0.40
codegen_flags: <defaults>
</compile_context>

<pallas_src>
import jax
import jax.numpy as jnp
from jax import lax
from jax.experimental import pallas as pl
from jax.experimental.pallas import tpu as pltpu


_TINY_BATCH = 1024  # below this, the call is launch-bound; use the gridless path


def _round_up(v, m):
    return ((v + m - 1) // m) * m


def _pq_kernel(x_ref, a_ref, o_ref):
    # x_ref: (tb, in_features)   a_ref: (n_neuron, in_features)   o_ref: (1, tb)
    # MXU: A @ x_tile.T -> (n_neuron, tb).  Batch sits on the lane axis, so the
    # squared reduction is a cheap sublane-sum and the (1, tb) result is
    # already lane-dense for an unmasked writeback.
    axt = lax.dot_general(
        a_ref[...],
        x_ref[...],
        dimension_numbers=(((1,), (1,)), ((), ())),  # contract in_features
        preferred_element_type=jnp.float32,
    )
    o_ref[...] = jnp.sum(axt * axt, axis=0, keepdims=True).astype(o_ref.dtype)


def passthrough_quadratic(x, A, *, block_b=4096):
    """y[i] = ||A @ x[i]||^2, returned with shape (B, 1) in float32."""
    B, in_features = x.shape
    n_neuron, in_features_a = A.shape
    assert in_features == in_features_a
    if A.dtype != x.dtype:
        A = A.astype(x.dtype)       # A is tiny; keep MXU operands in one dtype
    out_dtype = jnp.float32         # f32 accumulate & output regardless of input dtype

    if B <= _TINY_BATCH:
        # Launch-bound sizes: single whole-array VMEM blocks, no grid machinery.
        y_row = pl.pallas_call(
            _pq_kernel,
            out_shape=jax.ShapeDtypeStruct((1, B), out_dtype),
        )(x, A)
        return y_row.reshape(B, 1)

    # Large batch: tile only the (independent) row dimension of x.
    #  - cap the tile at ~B/2 so the grid has >= 2 steps (both v7x TCs work),
    #  - keep it a multiple of 128 so the lane-dense (1, blk) output block only
    #    needs masking on the ragged edge tile.
    blk = max(128, min(block_b, _round_up(pl.cdiv(B, 2), 128)))
    grid = (pl.cdiv(B, blk),)
    # VMEM budget: x tile is lane-padded to 128 lanes -> blk*512 B per f32
    # buffer, double-buffered (blk=4096 -> ~4 MiB); output buffers are tiny.
    y_row = pl.pallas_call(
        _pq_kernel,
        out_shape=jax.ShapeDtypeStruct((1, B), out_dtype),
        grid=grid,
        in_specs=[
            pl.BlockSpec((blk, in_features), lambda i: (i, 0)),
            pl.BlockSpec((n_neuron, in_features), lambda i: (0, 0)),  # resident
        ],
        out_specs=pl.BlockSpec((1, blk), lambda i: (0, i)),
        compiler_params=pltpu.CompilerParams(
            dimension_semantics=("parallel",),  # rows independent; v7x megacore
        ),
    )(x, A)
    # TODO(synk): if still DMA-limited, pack 4 batch rows per 128-lane row
    # (x -> (B/4, 128) against blockdiag(A,A,A,A)) to use all lanes of the x tile.
    return y_row.reshape(B, 1)


if __name__ == "__main__":
    key = jax.random.PRNGKey(0)
    kx, ka, kx2, kx3 = jax.random.split(key, 4)

    # Small shapes implied by the module: x (batch, in_features), A (n_neuron, in_features).
    B, in_features, n_neuron = 8, 32, 16
    x = jax.random.normal(kx, (B, in_features), dtype=jnp.float32)
    # Module's default init is zeros (degenerate); use the `A=` ctor path with a
    # deterministic random matrix so the check is meaningful.
    A = jax.random.normal(ka, (n_neuron, in_features), dtype=jnp.float32)

    def ref(xv, Av):
        axv = xv @ Av.T
        return jnp.sum(axv * axv, axis=1, keepdims=True)

    # Tiny / launch-bound path.
    y = passthrough_quadratic(x, A)
    jax.block_until_ready(y)
    assert y.shape == (B, 1)
    assert jnp.allclose(y, ref(x, A), atol=1e-3, rtol=2e-3)

    # Gridded path with a ragged edge tile (B not a multiple of the tile).
    B2 = 3000
    x2 = jax.random.normal(kx2, (B2, in_features), dtype=jnp.float32)
    y2 = passthrough_quadratic(x2, A)
    jax.block_until_ready(y2)
    assert y2.shape == (B2, 1)
    assert jnp.allclose(y2, ref(x2, A), atol=1e-3, rtol=2e-3)

    # Gridded path, even multiple of the full default tile (grid of 2 steps).
    B3 = 8192
    x3 = jax.random.normal(kx3, (B3, in_features), dtype=jnp.float32)
    y3 = passthrough_quadratic(x3, A)
    jax.block_until_ready(y3)
    assert y3.shape == (B3, 1)
    assert jnp.allclose(y3, ref(x3, A), atol=1e-3, rtol=2e-3)

    print("KERNEL_OK")
</pallas_src>

<mosaic_0001>
module attributes {stable_mosaic.version = 11 : i64} {
  func.func @_pq_kernel(%arg0: memref<8x32xf32, #tpu.memory_space<vmem>>, %arg1: memref<16x32xf32, #tpu.memory_space<vmem>>, %arg2: memref<1x8xf32, #tpu.memory_space<vmem>>) attributes {dimension_semantics = [], scalar_prefetch = 0 : i64, scratch_operands = 0 : i64, tpu.core_type = #tpu.core_type<tc>} {
    %c0 = arith.constant 0 : index
    %c0_0 = arith.constant 0 : index
    %0 = vector.load %arg1[%c0, %c0_0] : memref<16x32xf32, #tpu.memory_space<vmem>>, vector<16x32xf32>
    %c0_1 = arith.constant 0 : index
    %c0_2 = arith.constant 0 : index
    %1 = vector.load %arg0[%c0_1, %c0_2] : memref<8x32xf32, #tpu.memory_space<vmem>>, vector<8x32xf32>
    %cst = arith.constant dense<0.000000e+00> : vector<16x8xf32>
    %2 = tpu.matmul %0, %1, %cst {dimension_numbers = #tpu.dot_dimension_numbers<[1], [1], [0], [0], [0, 0, 1, 0], [], []>} : vector<16x32xf32>, vector<8x32xf32>, vector<16x8xf32> -> vector<16x8xf32>
    %3 = arith.mulf %2, %2 : vector<16x8xf32>
    %cst_3 = arith.constant dense<0.000000e+00> : vector<8xf32>
    %4 = vector.multi_reduction <add>, %3, %cst_3 [0] : vector<16x8xf32> to vector<8xf32>
    %5 = vector.shape_cast %4 : vector<8xf32> to vector<1x8xf32>
    %c0_4 = arith.constant 0 : index
    %c0_5 = arith.constant 0 : index
    %6 = vector.load %arg2[%c0_4, %c0_5] : memref<1x8xf32, #tpu.memory_space<vmem>>, vector<1x8xf32>
    tpu.vector_store %arg2[%c0_4, %c0_5], %5 {strides = array<i32>} : memref<1x8xf32, #tpu.memory_space<vmem>>, vector<1x8xf32>,
    return
  }
}

</mosaic_0001>

<llo_original>
// kernel: tpu_custom_call.1
$region0: #{tpu_custom_call.1}
  #allocation0 [shape = 'u32[]', space=smem, size = 0x4, offset = 0x4, fixed_abs, tag = 'smem constant byte address 0x4 - core index']
  #allocation1 [shape = 'u32[144,128]{1,0:T(1,128)}', space=vmem, size = 0x12000, scoped, tag = 'internal scratch']
  %s0 = inlined_call_operand.hbm [shape: f32[8,32], index: 0, kind: input, shape index: {}]
  %s1 = inlined_call_operand.hbm [shape: f32[16,32], index: 1, kind: input, shape index: {}]
  %s2 = inlined_call_operand.hbm [shape: f32[1,8], index: 2, kind: output, shape index: {}]
  %s3 = sld [smem:[#allocation0]]
  $region26: #{tpu_custom_call.1} parent=0
    _
  %s5 = ssub.s32 1, %s3
  %s6 = scalar_select 0, %s5, %s3
  $region1: #{tpu_custom_call.1} parent=0
    #allocation2 [shape = 'u8[4096]{0}', space=vmem, size = 0x1000, scoped, tag = 'input window, operand 0, single buffered']
    #allocation3 [shape = 's32[1]{0}', space=sflag, size = 0x4, scoped, tag = 'scoped memory for tpu_custom_call.1']
    #allocation4 [shape = 's32[1]{0}', space=sflag, size = 0x4, scoped, tag = 'scoped memory for tpu_custom_call.1']
    #allocation5 [shape = 'u8[8192]{0}', space=vmem, size = 0x2000, scoped, tag = 'input window, operand 1, single buffered']
    #allocation6 [shape = 's32[1]{0}', space=sflag, size = 0x4, scoped, tag = 'scoped memory for tpu_custom_call.1']
    #allocation7 [shape = 'u8[512]{0}', space=vmem, size = 0x400, scoped, tag = 'output window, operand 0, single buffered']
    %7 = vsyncpa [#allocation3], 0
    %8 = vsyncpa [#allocation6], 0
    %9 = vsyncpa [#allocation4], 0
    // Predicated region
    $region2: #{tpu_custom_call.1} parent=1 // pred_check
      _
    $region3: #{tpu_custom_call.1} parent=1 // pred_check_branch
      %11 = sbr.rel (0) target = $region5
    $region4: #{tpu_custom_call.1} parent=1 // pred_region
      %s13 = ssub.s32 128, 128
      %14 = vsyncadd [#allocation3], %s13
      %s16 = sshll.u32 [#allocation2], 4
      %s17 = int_to_ptr.vmem [resolvable:$true] %s16
      %19 = dma.hbm_to_vmem [thread:$0]  %s0, 128, %s17, [#allocation3]
    $region5: #{tpu_custom_call.1} parent=1 // pred_fallthru
      _
    // Predicated region
    $region6: #{tpu_custom_call.1} parent=1 // pred_check
      _
    $region7: #{tpu_custom_call.1} parent=1 // pred_check_branch
      %21 = sbr.rel (0) target = $region9
    $region8: #{tpu_custom_call.1} parent=1 // pred_region
      %s23 = ssub.s32 256, 256
      %24 = vsyncadd [#allocation6], %s23
      %s25 = sshll.u32 [#allocation5], 4
      %s26 = int_to_ptr.vmem [resolvable:$true] %s25
      %31 = dma.hbm_to_vmem [thread:$0]  %s1, 256, %s26, [#allocation6], 128, 128, 8
    $region9: #{tpu_custom_call.1} parent=1 // pred_fallthru
      _
    // Predicated region
    $region10: #{tpu_custom_call.1} parent=1 // pred_check
      _
    $region11: #{tpu_custom_call.1} parent=1 // pred_check_branch
      %33 = sbr.rel (0) target = $region13
    $region12: #{tpu_custom_call.1} parent=1 // pred_region
      %34 = dma.done [#allocation3], 128
    $region13: #{tpu_custom_call.1} parent=1 // pred_fallthru
      _
    // Predicated region
    $region14: #{tpu_custom_call.1} parent=1 // pred_check
      _
    $region15: #{tpu_custom_call.1} parent=1 // pred_check_branch
      %36 = sbr.rel (0) target = $region17
    $region16: #{tpu_custom_call.1} parent=1 // pred_region
      %37 = dma.done [#allocation6], 256
    $region17: #{tpu_custom_call.1} parent=1 // pred_fallthru
      _
    %v38 = vld [vmem:[#allocation5] sm:$0xff]
    %v39 = vld [vmem:[#allocation5 + $0x8] sm:$0xff]
    %v40 = vld [vmem:[#allocation2] sm:$0xff]
    %vm41 = vcmask 261120
    %v43 = vsel %vm41, %v38, 0
    %v46 = vsel %vm41, %v39, 0
    %v49 = vsel %vm41, %v40, 0
    %51 = vmatprep.subr.mxu0 0.0
    %52 = vmatpush1.xpose.msra.mxu0 %v49
    %53 = vmatprep.subr.mxu0 0.0
    %54 = vmatpush1.xpose.msra.mxu0 0.0
    %55 = vmatprep.subr.mxu0 0.0
    %56 = vmatpush1.xpose.msra.mxu0 0.0
    %57 = vmatprep.subr.mxu0 0.0
    %58 = vmatpush1.xpose.msra.mxu0 0.0
    %59 = vmatprep.subr.mxu0 0.0
    %60 = vmatpush1.xpose.msra.mxu0 0.0
    %61 = vmatprep.subr.mxu0 0.0
    %62 = vmatpush1.xpose.msra.mxu0 0.0
    %63 = vmatprep.subr.mxu0 0.0
    %64 = vmatpush1.xpose.msra.mxu0 0.0
    %65 = vmatprep.subr.mxu0 0.0
    %66 = vmatpush1.xpose.msra.mxu0 0.0
    %67 = vmatprep.subr.mxu0 0.0
    %68 = vmatpush1.xpose.msra.mxu0 0.0
    %69 = vmatprep.subr.mxu0 0.0
    %70 = vmatpush1.xpose.msra.mxu0 0.0
    %71 = vmatprep.subr.mxu0 0.0
    %72 = vmatpush1.xpose.msra.mxu0 0.0
    %73 = vmatprep.subr.mxu0 0.0
    %74 = vmatpush1.xpose.msra.mxu0 0.0
    %75 = vmatprep.subr.mxu0 0.0
    %76 = vmatpush1.xpose.msra.mxu0 0.0
    %77 = vmatprep.subr.mxu0 0.0
    %78 = vmatpush1.xpose.msra.mxu0 0.0
    %79 = vmatprep.subr.mxu0 0.0
    %80 = vmatpush1.xpose.msra.mxu0 0.0
    %81 = vmatprep.subr.mxu0 0.0
    %82 = vmatpush1.xpose.msra.mxu0 0.0
    %83 = vmatprep.subr.mxu0 0.0
    %84 = vmatpush1.xpose.msra.mxu0 0.0
    %85 = vmatprep.subr.mxu0 0.0
    %86 = vmatpush1.xpose.msra.mxu0 0.0
    %87 = vmatprep.subr.mxu0 0.0
    %88 = vmatpush1.xpose.msra.mxu0 0.0
    %89 = vmatprep.subr.mxu0 0.0
    %90 = vmatpush1.xpose.msra.mxu0 0.0
    %91 = vmatprep.subr.mxu0 0.0
    %92 = vmatpush1.xpose.msra.mxu0 0.0
    %93 = vmatprep.subr.mxu0 0.0
    %94 = vmatpush1.xpose.msra.mxu0 0.0
    %95 = vmatprep.subr.mxu0 0.0
    %96 = vmatpush1.xpose.msra.mxu0 0.0
    %97 = vmatprep.subr.mxu0 0.0
    %98 = vmatpush1.xpose.msra.mxu0 0.0
    %99 = vmatprep.subr.mxu0 0.0
    %100 = vmatpush1.xpose.msra.mxu0 0.0
    %101 = vmatprep.subr.mxu0 0.0
    %102 = vmatpush1.xpose.msra.mxu0 0.0
    %103 = vmatprep.subr.mxu0 0.0
    %104 = vmatpush1.xpose.msra.mxu0 0.0
    %105 = vmatprep.subr.mxu0 0.0
    %106 = vmatpush1.xpose.msra.mxu0 0.0
    %107 = vmatprep.subr.mxu0 0.0
    %108 = vmatpush1.xpose.msra.mxu0 0.0
    %109 = vmatprep.subr.mxu0 0.0
    %110 = vmatpush1.xpose.msra.mxu0 0.0
    %111 = vmatprep.subr.mxu0 0.0
    %112 = vmatpush1.xpose.msra.mxu0 0.0
    %113 = vmatprep.subr.mxu0 0.0
    %114 = vmatpush1.xpose.msra.mxu0 0.0
    %115 = vmatprep.mubr.f32.mxu0 0.0
    %116 = vmatmul.mubr.f32.gmra.mrb[0].mxu0 %v43
    %v117 = vpop.f32.mrb[0].mxu0
    %v118 = vadd.f32 0.0, %v117
    %v119 = vpop.f32.mrb[0].mxu0
    %120 = vmatprep.mubr.f32.mxu0 0.0
    %121 = vmatmul.mubr.f32.gmra.mrb[0].mxu0 %v46
    %v122 = vpop.f32.mrb[0].mxu0
    %v123 = vadd.f32 0.0, %v122
    %v124 = vpop.f32.mrb[0].mxu0
    %125 = vdwg.mxu0
    %v126 = vmul.f32 %v118, %v118
    %v127 = vmul.f32 %v123, %v123
    %vm128 = vcmask 64512
    %v129 = vsel %vm128, %v126, 0.0
    %v130 = vsel %vm128, %v127, 0.0
    %v131 = vadd.f32 %v129, %v130
    %v132 = vrot.slane %v131, 4
    %v133 = vadd.f32 %v131, %v132
    %v134 = vrot.slane %v133, 2
    %v135 = vadd.f32 %v133, %v134
    %v136 = vrot.slane %v135, 1
    %v137 = vadd.f32 %v135, %v136
    %vm138 = vcmask 57344
    %139 = vst.msk [vmem:[#allocation7] sm:$0x1] %vm138, %v137
    // Predicated region
    $region18: #{tpu_custom_call.1} parent=1 // pred_check
      _
    $region19: #{tpu_custom_call.1} parent=1 // pred_check_branch
      %141 = sbr.rel (0) target = $region21
    $region20: #{tpu_custom_call.1} parent=1 // pred_region
      %s143 = ssub.s32 16, 16
      %144 = vsyncadd [#allocation4], %s143
      %s146 = sshll.u32 [#allocation7], 4
      %s147 = int_to_ptr.vmem [resolvable:$true] %s146
      %149 = dma.vmem_to_hbm [thread:$0]  %s147, 16, %s2, [#allocation4]
    $region21: #{tpu_custom_call.1} parent=1 // pred_fallthru
      _
    // Predicated region
    $region22: #{tpu_custom_call.1} parent=1 // pred_check
      _
    $region23: #{tpu_custom_call.1} parent=1 // pred_check_branch
      %151 = sbr.rel (0) target = $region25
    $region24: #{tpu_custom_call.1} parent=1 // pred_region
      %152 = dma.done [#allocation4], 16
    $region25: #{tpu_custom_call.1} parent=1 // pred_fallthru
      _
    %153 = vsyncpa [#allocation3], 1
    %154 = vsyncpa [#allocation6], 1
    %155 = vsyncpa [#allocation4], 1

</llo_original>
